<compile_context>
chip_gen: v5e
topology: v5e:2x2
jax: 0.10.0
libtpu: 0.0.40
codegen_flags: <defaults>
</compile_context>

<pallas_src>
import jax
import jax.numpy as jnp
from jax import lax
from jax.experimental import pallas as pl
from jax.experimental.pallas import tpu as pltpu


# ------------------------------- kernel -------------------------------------

def _make_bottleneck_kernel(seq_len, cout_p, c3):
    """Kernel closure over the static sequence length / channel widths."""

    def kernel(x_ref, w1_ref, w2_ref, w3_ref, bias_ref, out_ref):
        tl = x_ref.shape[0]                       # whole sequences per tile

        x_bf = x_ref[...]                         # (TL, Cin) bf16
        b = bias_ref[...]                         # (3, BW)   f32 packed shifts
        b1 = b[0:1, :cout_p]
        b2 = b[1:2, :cout_p]
        b3 = b[2:3, :c3]

        # --- conv1 (1x1) + folded BN1 + ReLU : bf16 MXU, f32 accumulate ------
        h1 = jnp.dot(x_bf, w1_ref[...], preferred_element_type=jnp.float32)
        h1 = jnp.maximum(h1 + b1, 0.0)            # (TL, Cout_p) f32

        # --- conv2 (k=3, stride=1, pad=1) + folded BN2 + ReLU ----------------
        # +-1 taps via XLU rolls; sequence-boundary rows are zeroed with masks
        # built in-kernel from the row iota (tiles hold whole sequences, so
        # local_row % L is the in-sequence position).  Three accumulated
        # matmuls -- no (TL, 3*Cout_p) concat operand is materialized.
        pos = lax.broadcasted_iota(jnp.int32, (tl, 1), 0) % seq_len
        mask_prev = (pos != 0).astype(jnp.float32)            # 0 at seq starts
        mask_next = (pos != seq_len - 1).astype(jnp.float32)  # 0 at seq ends

        h1_bf = h1.astype(jnp.bfloat16)
        t_prev = (pltpu.roll(h1, shift=1, axis=0) * mask_prev
                  ).astype(jnp.bfloat16)                       # h1[l-1]
        t_next = (pltpu.roll(h1, shift=tl - 1, axis=0) * mask_next
                  ).astype(jnp.bfloat16)                       # h1[l+1]

        acc = jnp.dot(h1_bf, w2_ref[1], preferred_element_type=jnp.float32)
        acc = acc + jnp.dot(t_prev, w2_ref[0], preferred_element_type=jnp.float32)
        acc = acc + jnp.dot(t_next, w2_ref[2], preferred_element_type=jnp.float32)
        h2_bf = jnp.maximum(acc + b2, 0.0).astype(jnp.bfloat16)  # (TL, Cout_p)

        # --- conv3 (1x1, expansion=4) + folded BN3 ---------------------------
        h3 = jnp.dot(h2_bf, w3_ref[...],
                     preferred_element_type=jnp.float32) + b3     # (TL, C3)

        # --- residual add (f32) + ReLU, store bf16 ---------------------------
        out_ref[...] = jnp.maximum(h3 + x_bf.astype(jnp.float32),
                                   0.0).astype(out_ref.dtype)

    return kernel


# ------------------------------- tiling --------------------------------------

def _round_up(x, m):
    return (x + m - 1) // m * m


def _derive_max_rows(vmem_budget_bytes, cin, cout_p, c3):
    """Rows per tile so x/out double-buffers + intermediates + weights fit VMEM."""
    bw = max(cout_p, c3)
    fixed = (2 * 2 * (cin * cout_p + 3 * cout_p * cout_p + cout_p * c3)  # bf16 w, 2 bufs
             + 4 * 3 * bw)                                               # f32 bias
    per_row = (2 * 2 * cin         # x block, double-buffered, bf16
               + 2 * 2 * c3        # out block, double-buffered, bf16
               + 4 * 2 * cout_p    # h1 f32 + conv2 accumulator f32
               + 2 * 4 * cout_p    # h1_bf + t_prev + t_next + h2_bf (bf16)
               + 4 * 2 * c3)       # h3 f32 + upcast residual f32
    rows = (vmem_budget_bytes - fixed) // max(per_row, 1)
    return max((rows // 8) * 8, 8)


def _choose_rows_per_tile(n, l, max_rows, prefer_multi_tile=True):
    """Rows per grid step = whole sequences, so the rolls never cross sequences.

    Never silently exceeds `max_rows` (fixed footgun); the block's second-minor
    dim must be a multiple of 8 unless it spans the full row extent.
    """
    def valid(s):
        tl = s * l
        if tl > max_rows:
            return False
        return tl % 8 == 0 or s == n          # full extent waives the 8-rule

    divisors = [s for s in range(n, 0, -1) if n % s == 0 and valid(s)]
    if not divisors:
        # TODO(synk): halo-exchange sub-sequence tiling for very long sequences.
        raise ValueError(
            f"no whole-sequence tiling fits VMEM budget: N={n}, L={l}, "
            f"max_rows={max_rows}")
    if prefer_multi_tile and n > 1:
        multi = [s for s in divisors if s < n]   # >=2 tiles -> both v7x TCs busy
        if multi:
            return multi[0] * l
    return divisors[0] * l


# ------------------------------- wrapper --------------------------------------

def encoder_bottleneck_pallas(x_nlc, kp, *, max_rows_per_tile=2048,
                              vmem_limit_bytes=64 * 1024 * 1024,
                              prefer_multi_tile=True):
    """x_nlc: (N, L, Cin) channels-last (bf16 preferred).  Returns (N, L, C3) bf16."""
    N, L, Cin = x_nlc.shape
    assert Cin == kp["cin"], "parameter/input channel mismatch"
    assert Cin == kp["c3"], "identity add requires in_channels == 4 * out_channels"

    cout_p, c3 = kp["cout_p"], kp["c3"]
    NL = N * L

    budget_rows = _derive_max_rows(int(0.7 * vmem_limit_bytes), Cin, cout_p, c3)
    TL = _choose_rows_per_tile(N, L, min(max_rows_per_tile, budget_rows),
                               prefer_multi_tile)
    num_tiles = NL // TL

    # No channel pad, no extra HBM pass: reshape is free, cast is a no-op if
    # the producer already emits bf16.
    x_flat = x_nlc.reshape(NL, Cin).astype(jnp.bfloat16)

    kernel = _make_bottleneck_kernel(L, cout_p, c3)
    bw = kp["bias"].shape[1]

    out_flat = pl.pallas_call(
        kernel,
        out_shape=jax.ShapeDtypeStruct((NL, c3), jnp.bfloat16),
        grid=(num_tiles,),
        in_specs=[
            pl.BlockSpec((TL, Cin), lambda t: (t, 0)),              # x rows (bf16)
            pl.BlockSpec((Cin, cout_p), lambda t: (0, 0)),          # w1 (scale-folded)
            pl.BlockSpec((3, cout_p, cout_p), lambda t: (0, 0, 0)),  # conv2 taps
            pl.BlockSpec((cout_p, c3), lambda t: (0, 0)),           # w3 (scale-folded)
            pl.BlockSpec((3, bw), lambda t: (0, 0)),                # packed BN shifts
        ],
        out_specs=pl.BlockSpec((TL, c3), lambda t: (t, 0)),
        compiler_params=pltpu.CompilerParams(
            dimension_semantics=("parallel",),
            vmem_limit_bytes=vmem_limit_bytes),
    )(x_flat, kp["w1"], kp["w2"], kp["w3"], kp["bias"])

    return out_flat.reshape(N, L, c3)


# ------------------------- parameter construction ----------------------------

def make_torch_like_params(key, in_channels, out_channels, expansion=4):
    """Raw parameters in PyTorch layouts (Conv1d weight (Cout,Cin,K) + bias, BN stats)."""
    c3 = out_channels * expansion
    ks = jax.random.split(key, 18)
    p = {
        "w1": 0.1 * jax.random.normal(ks[0], (out_channels, in_channels, 1), jnp.float32),
        "b1": 0.05 * jax.random.normal(ks[1], (out_channels,), jnp.float32),
        "w2": 0.1 * jax.random.normal(ks[2], (out_channels, out_channels, 3), jnp.float32),
        "b2": 0.05 * jax.random.normal(ks[3], (out_channels,), jnp.float32),
        "w3": 0.1 * jax.random.normal(ks[4], (c3, out_channels, 1), jnp.float32),
        "b3": 0.05 * jax.random.normal(ks[5], (c3,), jnp.float32),
    }

    def bn(kg, kb, km, kv, c):
        gamma = 1.0 + 0.1 * jax.random.normal(kg, (c,), jnp.float32)
        beta = 0.1 * jax.random.normal(kb, (c,), jnp.float32)
        mean = 0.1 * jax.random.normal(km, (c,), jnp.float32)
        var = 1.0 + 0.1 * jax.random.uniform(kv, (c,), jnp.float32)
        return gamma, beta, mean, var

    p["bn1"] = bn(ks[6], ks[7], ks[8], ks[9], out_channels)
    p["bn2"] = bn(ks[10], ks[11], ks[12], ks[13], out_channels)
    p["bn3"] = bn(ks[14], ks[15], ks[16], ks[17], c3)
    return p


def fold_and_pack_params(p, eps=1e-5, lane_align=128):
    """Fold BN scale into bf16 conv weights; pad only the intermediate cout dim.

    lane_align=128 is v5e-native; use 256 on v6e/v7x at production widths so
    the 256-wide MXU columns are fully used.  Padded weight rows/cols and bias
    lanes are exactly zero (required so padded h1/h2 lanes stay zero).
    """
    cout, cin, _ = p["w1"].shape
    c3 = p["w3"].shape[0]
    cout_p = _round_up(cout, lane_align)

    def fold(bn_stats, conv_b):
        gamma, beta, mean, var = bn_stats
        scale = gamma / jnp.sqrt(var + eps)
        shift = beta + (conv_b - mean) * scale
        return scale, shift

    s1, sh1 = fold(p["bn1"], p["b1"])
    s2, sh2 = fold(p["bn2"], p["b2"])
    s3, sh3 = fold(p["bn3"], p["b3"])

    # channels-last matmul weights with BN scale folded on the output channel
    w1 = jnp.transpose(p["w1"][:, :, 0]) * s1[None, :]            # (Cin, Cout)
    w2 = jnp.transpose(p["w2"], (2, 1, 0)) * s2[None, None, :]    # (3, Cout, Cout) taps l-1,l,l+1
    w3 = jnp.transpose(p["w3"][:, :, 0]) * s3[None, :]            # (Cout, C3)

    w1_p = jnp.pad(w1, ((0, 0), (0, cout_p - cout))).astype(jnp.bfloat16)
    w2_p = jnp.pad(w2, ((0, 0), (0, cout_p - cout),
                        (0, cout_p - cout))).astype(jnp.bfloat16)
    w3_p = jnp.pad(w3, ((0, cout_p - cout), (0, 0))).astype(jnp.bfloat16)

    bw = max(cout_p, c3)
    bias = jnp.zeros((3, bw), jnp.float32)
    bias = bias.at[0, :cout].set(sh1).at[1, :cout].set(sh2).at[2, :c3].set(sh3)

    return {"w1": w1_p, "w2": w2_p, "w3": w3_p, "bias": bias,
            "cin": cin, "cout": cout, "c3": c3, "cout_p": cout_p}


# ------------------------ pure-JAX reference (check) --------------------------

def _conv1d_nlc(x, w_torch, pad):
    # x: (N, L, Cin), w_torch: (Cout, Cin, K) -> (N, L, Cout)
    w = jnp.transpose(w_torch, (2, 1, 0))  # (K, Cin, Cout) == 'WIO'
    return lax.conv_general_dilated(
        x, w, window_strides=(1,), padding=[(pad, pad)],
        dimension_numbers=("NWC", "WIO", "NWC"))


def ref_forward(x_nlc, p, eps=1e-5):
    def bn(h, stats):
        gamma, beta, mean, var = stats
        return (h - mean) * (gamma / jnp.sqrt(var + eps)) + beta

    h = _conv1d_nlc(x_nlc, p["w1"], 0) + p["b1"]
    h = jnp.maximum(bn(h, p["bn1"]), 0.0)
    h = _conv1d_nlc(h, p["w2"], 1) + p["b2"]
    h = jnp.maximum(bn(h, p["bn2"]), 0.0)
    h = _conv1d_nlc(h, p["w3"], 0) + p["b3"]
    h = bn(h, p["bn3"])
    return jnp.maximum(h + x_nlc, 0.0)


# ----------------------------------- main -------------------------------------

if __name__ == "__main__":
    key = jax.random.PRNGKey(0)
    k_x, k_p = jax.random.split(key)

    # Small shapes consistent with the module; identity add requires
    # in_channels == out_channels * expansion.
    N, L = 2, 16
    out_channels = 4
    in_channels = out_channels * 4   # 16

    # PyTorch input would be NCL = (N, C, L); the kernel wrapper takes NLC.
    x_f32 = jax.random.normal(k_x, (N, L, in_channels), jnp.float32)
    x_bf16 = x_f32.astype(jnp.bfloat16)           # bf16 HBM-facing activations

    raw = make_torch_like_params(k_p, in_channels, out_channels)
    kparams = fold_and_pack_params(raw)

    out = jax.block_until_ready(encoder_bottleneck_pallas(x_bf16, kparams))
    # Reference sees the same bf16-rounded input, computed fully in f32.
    ref = jax.block_until_ready(ref_forward(x_bf16.astype(jnp.float32), raw))

    assert out.shape == (N, L, in_channels)
    max_err = float(jnp.max(jnp.abs(out.astype(jnp.float32) - ref)))
    # bf16 MXU operands / bf16 output with f32 accumulation & residual math.
    assert max_err < 6e-2, f"mismatch vs JAX reference: max abs err {max_err}"

    print("KERNEL_OK")
</pallas_src>

<mosaic_0001>
module attributes {stable_mosaic.version = 11 : i64} {
  func.func @kernel(%arg0: i32, %arg1: memref<16x16xbf16, #tpu.memory_space<vmem>>, %arg2: memref<16x128xbf16, #tpu.memory_space<vmem>>, %arg3: memref<3x128x128xbf16, #tpu.memory_space<vmem>>, %arg4: memref<128x16xbf16, #tpu.memory_space<vmem>>, %arg5: memref<3x128xf32, #tpu.memory_space<vmem>>, %arg6: memref<16x16xbf16, #tpu.memory_space<vmem>>) attributes {dimension_semantics = [#tpu.dimension_semantics<parallel>], iteration_bounds = array<i64: 2>, scalar_prefetch = 0 : i64, scratch_operands = 0 : i64, tpu.core_type = #tpu.core_type<tc>, window_params = [{transform_indices = @transform_0, window_bounds = array<i64: 16, 16>}, {pipeline_mode = #tpu.pipeline_mode<synchronous>, transform_indices = @transform_1, window_bounds = array<i64: 16, 128>}, {pipeline_mode = #tpu.pipeline_mode<synchronous>, transform_indices = @transform_2, window_bounds = array<i64: 3, 128, 128>}, {pipeline_mode = #tpu.pipeline_mode<synchronous>, transform_indices = @transform_3, window_bounds = array<i64: 128, 16>}, {pipeline_mode = #tpu.pipeline_mode<synchronous>, transform_indices = @transform_4, window_bounds = array<i64: 3, 128>}, {transform_indices = @transform_5, window_bounds = array<i64: 16, 16>}]} {
    %c0 = arith.constant 0 : index
    %c0_0 = arith.constant 0 : index
    %0 = vector.load %arg1[%c0, %c0_0] : memref<16x16xbf16, #tpu.memory_space<vmem>>, vector<16x16xbf16>
    %c0_1 = arith.constant 0 : index
    %c0_2 = arith.constant 0 : index
    %1 = vector.load %arg5[%c0_1, %c0_2] : memref<3x128xf32, #tpu.memory_space<vmem>>, vector<3x128xf32>
    %2 = vector.extract_strided_slice %1 {offsets = [0, 0], sizes = [1, 128], strides = [1, 1]} : vector<3x128xf32> to vector<1x128xf32>
    %3 = vector.extract_strided_slice %1 {offsets = [1, 0], sizes = [1, 128], strides = [1, 1]} : vector<3x128xf32> to vector<1x128xf32>
    %4 = vector.extract_strided_slice %1 {offsets = [2, 0], sizes = [1, 16], strides = [1, 1]} : vector<3x128xf32> to vector<1x16xf32>
    %c0_3 = arith.constant 0 : index
    %c0_4 = arith.constant 0 : index
    %5 = vector.load %arg2[%c0_3, %c0_4] : memref<16x128xbf16, #tpu.memory_space<vmem>>, vector<16x128xbf16>
    %cst = arith.constant dense<0.000000e+00> : vector<16x128xf32>
    %6 = tpu.matmul %0, %5, %cst {dimension_numbers = #tpu.dot_dimension_numbers<[1], [0], [0], [1], [0, 0, 1, 1], [], []>} : vector<16x16xbf16>, vector<16x128xbf16>, vector<16x128xf32> -> vector<16x128xf32>
    %7 = vector.broadcast %2 : vector<1x128xf32> to vector<16x128xf32>
    %8 = arith.addf %6, %7 : vector<16x128xf32>
    %cst_5 = arith.constant 0.000000e+00 : f32
    %9 = vector.broadcast %cst_5 : f32 to vector<16x128xf32>
    %10 = arith.maximumf %8, %9 : vector<16x128xf32>
    %11 = tpu.iota {dimensions = array<i32: 0>} : vector<16x1xi32>
    %c16_i32 = arith.constant 16 : i32
    %c0_i32 = arith.constant 0 : i32
    %12 = arith.cmpi eq, %c16_i32, %c0_i32 : i32
    %c1_i32 = arith.constant 1 : i32
    %13 = arith.select %12, %c1_i32, %c16_i32 : i32
    %14 = vector.broadcast %13 : i32 to vector<16x1xi32>
    %15 = arith.remsi %11, %14 : vector<16x1xi32>
    %c0_i32_6 = arith.constant 0 : i32
    %16 = vector.broadcast %c0_i32_6 : i32 to vector<16x1xi32>
    %17 = arith.cmpi ne, %15, %16 : vector<16x1xi32>
    %c0_i32_7 = arith.constant 0 : i32
    %18 = vector.broadcast %c0_i32_7 : i32 to vector<16x1xi32>
    %19 = arith.cmpi slt, %15, %18 : vector<16x1xi32>
    %c0_i32_8 = arith.constant 0 : i32
    %20 = arith.cmpi slt, %13, %c0_i32_8 : i32
    %21 = vector.broadcast %20 : i1 to vector<16x1xi1>
    %22 = vector.broadcast %21 : vector<16x1xi1> to vector<16x1xi1>
    %23 = arith.xori %19, %22 : vector<16x1xi1>
    %24 = arith.andi %23, %17 : vector<16x1xi1>
    %25 = vector.broadcast %13 : i32 to vector<16x1xi32>
    %26 = arith.addi %15, %25 : vector<16x1xi32>
    %27 = arith.select %24, %26, %15 : vector<16x1xi1>, vector<16x1xi32>
    %c0_i32_9 = arith.constant 0 : i32
    %28 = vector.broadcast %c0_i32_9 : i32 to vector<16x1xi32>
    %29 = arith.cmpi ne, %27, %28 : vector<16x1xi32>
    %30 = arith.extui %29 : vector<16x1xi1> to vector<16x1xi32>
    %31 = arith.sitofp %30 : vector<16x1xi32> to vector<16x1xf32>
    %c15_i32 = arith.constant 15 : i32
    %32 = vector.broadcast %c15_i32 : i32 to vector<16x1xi32>
    %33 = arith.cmpi ne, %27, %32 : vector<16x1xi32>
    %34 = arith.extui %33 : vector<16x1xi1> to vector<16x1xi32>
    %35 = arith.sitofp %34 : vector<16x1xi32> to vector<16x1xf32>
    %36 = arith.truncf %10 : vector<16x128xf32> to vector<16x128xbf16>
    %c1_i32_10 = arith.constant 1 : i32
    %37 = tpu.dynamic_rotate %10 by %c1_i32_10 dim 0 : vector<16x128xf32>, i32 -> vector<16x128xf32>
    %38 = vector.broadcast %31 : vector<16x1xf32> to vector<16x128xf32>
    %39 = arith.mulf %37, %38 : vector<16x128xf32>
    %40 = arith.truncf %39 : vector<16x128xf32> to vector<16x128xbf16>
    %c15_i32_11 = arith.constant 15 : i32
    %41 = tpu.dynamic_rotate %10 by %c15_i32_11 dim 0 : vector<16x128xf32>, i32 -> vector<16x128xf32>
    %42 = vector.broadcast %35 : vector<16x1xf32> to vector<16x128xf32>
    %43 = arith.mulf %41, %42 : vector<16x128xf32>
    %44 = arith.truncf %43 : vector<16x128xf32> to vector<16x128xbf16>
    %c1 = arith.constant 1 : index
    %c0_12 = arith.constant 0 : index
    %c0_13 = arith.constant 0 : index
    %45 = vector.load %arg3[%c1, %c0_12, %c0_13] : memref<3x128x128xbf16, #tpu.memory_space<vmem>>, vector<1x128x128xbf16>
    %46 = vector.shape_cast %45 : vector<1x128x128xbf16> to vector<128x128xbf16>
    %cst_14 = arith.constant dense<0.000000e+00> : vector<16x128xf32>
    %47 = tpu.matmul %36, %46, %cst_14 {dimension_numbers = #tpu.dot_dimension_numbers<[1], [0], [0], [1], [0, 0, 1, 1], [], []>} : vector<16x128xbf16>, vector<128x128xbf16>, vector<16x128xf32> -> vector<16x128xf32>
    %c0_15 = arith.constant 0 : index
    %c0_16 = arith.constant 0 : index
    %c0_17 = arith.constant 0 : index
    %48 = vector.load %arg3[%c0_15, %c0_16, %c0_17] : memref<3x128x128xbf16, #tpu.memory_space<vmem>>, vector<1x128x128xbf16>
    %49 = vector.shape_cast %48 : vector<1x128x128xbf16> to vector<128x128xbf16>
    %cst_18 = arith.constant dense<0.000000e+00> : vector<16x128xf32>
    %50 = tpu.matmul %40, %49, %cst_18 {dimension_numbers = #tpu.dot_dimension_numbers<[1], [0], [0], [1], [0, 0, 1, 1], [], []>} : vector<16x128xbf16>, vector<128x128xbf16>, vector<16x128xf32> -> vector<16x128xf32>
    %51 = arith.addf %47, %50 : vector<16x128xf32>
    %c2 = arith.constant 2 : index
    %c0_19 = arith.constant 0 : index
    %c0_20 = arith.constant 0 : index
    %52 = vector.load %arg3[%c2, %c0_19, %c0_20] : memref<3x128x128xbf16, #tpu.memory_space<vmem>>, vector<1x128x128xbf16>
    %53 = vector.shape_cast %52 : vector<1x128x128xbf16> to vector<128x128xbf16>
    %cst_21 = arith.constant dense<0.000000e+00> : vector<16x128xf32>
    %54 = tpu.matmul %44, %53, %cst_21 {dimension_numbers = #tpu.dot_dimension_numbers<[1], [0], [0], [1], [0, 0, 1, 1], [], []>} : vector<16x128xbf16>, vector<128x128xbf16>, vector<16x128xf32> -> vector<16x128xf32>
    %55 = arith.addf %51, %54 : vector<16x128xf32>
    %56 = vector.broadcast %3 : vector<1x128xf32> to vector<16x128xf32>
    %57 = arith.addf %55, %56 : vector<16x128xf32>
    %cst_22 = arith.constant 0.000000e+00 : f32
    %58 = vector.broadcast %cst_22 : f32 to vector<16x128xf32>
    %59 = arith.maximumf %57, %58 : vector<16x128xf32>
    %60 = arith.truncf %59 : vector<16x128xf32> to vector<16x128xbf16>
    %c0_23 = arith.constant 0 : index
    %c0_24 = arith.constant 0 : index
    %61 = vector.load %arg4[%c0_23, %c0_24] : memref<128x16xbf16, #tpu.memory_space<vmem>>, vector<128x16xbf16>
    %cst_25 = arith.constant dense<0.000000e+00> : vector<16x16xf32>
    %62 = tpu.matmul %60, %61, %cst_25 {dimension_numbers = #tpu.dot_dimension_numbers<[1], [0], [0], [1], [0, 0, 1, 1], [], []>} : vector<16x128xbf16>, vector<128x16xbf16>, vector<16x16xf32> -> vector<16x16xf32>
    %63 = vector.broadcast %4 : vector<1x16xf32> to vector<16x16xf32>
    %64 = arith.addf %62, %63 : vector<16x16xf32>
    %65 = arith.extf %0 : vector<16x16xbf16> to vector<16x16xf32>
    %66 = arith.addf %64, %65 : vector<16x16xf32>
    %cst_26 = arith.constant 0.000000e+00 : f32
    %67 = vector.broadcast %cst_26 : f32 to vector<16x16xf32>
    %68 = arith.maximumf %66, %67 : vector<16x16xf32>
    %69 = arith.truncf %68 : vector<16x16xf32> to vector<16x16xbf16>
    %c0_27 = arith.constant 0 : index
    %c0_28 = arith.constant 0 : index
    %70 = vector.load %arg6[%c0_27, %c0_28] : memref<16x16xbf16, #tpu.memory_space<vmem>>, vector<16x16xbf16>
    tpu.vector_store %arg6[%c0_27, %c0_28], %69 {strides = array<i32>} : memref<16x16xbf16, #tpu.memory_space<vmem>>, vector<16x16xbf16>,
    return
  }
  func.func @transform_0(%arg0: i32) -> (i32, i32) {
    %c0_i32 = arith.constant 0 : i32
    %c0_i32_0 = arith.constant 0 : i32
    return %arg0, %c0_i32 : i32, i32
  }
  func.func @transform_1(%arg0: i32) -> (i32, i32) {
    %c0_i32 = arith.constant 0 : i32
    %c0_i32_0 = arith.constant 0 : i32
    %c0_i32_1 = arith.constant 0 : i32
    return %c0_i32, %c0_i32_0 : i32, i32
  }
  func.func @transform_2(%arg0: i32) -> (i32, i32, i32) {
    %c0_i32 = arith.constant 0 : i32
    %c0_i32_0 = arith.constant 0 : i32
    %c0_i32_1 = arith.constant 0 : i32
    %c0_i32_2 = arith.constant 0 : i32
    return %c0_i32, %c0_i32_0, %c0_i32_1 : i32, i32, i32
  }
  func.func @transform_3(%arg0: i32) -> (i32, i32) {
    %c0_i32 = arith.constant 0 : i32
    %c0_i32_0 = arith.constant 0 : i32
    %c0_i32_1 = arith.constant 0 : i32
    return %c0_i32, %c0_i32_0 : i32, i32
  }
  func.func @transform_4(%arg0: i32) -> (i32, i32) {
    %c0_i32 = arith.constant 0 : i32
    %c0_i32_0 = arith.constant 0 : i32
    %c0_i32_1 = arith.constant 0 : i32
    return %c0_i32, %c0_i32_0 : i32, i32
  }
  func.func @transform_5(%arg0: i32) -> (i32, i32) {
    %c0_i32 = arith.constant 0 : i32
    %c0_i32_0 = arith.constant 0 : i32
    return %arg0, %c0_i32 : i32, i32
  }
}

</mosaic_0001>

<llo_original>
// kernel: tpu_custom_call.1
$region0: #{tpu_custom_call.1}
  #allocation0 [shape = 'u32[]', space=smem, size = 0x4, offset = 0x4, fixed_abs, tag = 'smem constant byte address 0x4 - core index']
  #allocation1 [shape = 'u32[72,128]{1,0:T(1,128)}', space=vmem, size = 0x9000, scoped, tag = 'internal scratch']
  %s0 = inlined_call_operand.vmem [shape: bf16[32,16], index: 0, kind: input, shape index: {}]
  %s1 = inlined_call_operand.vmem [shape: bf16[16,128], index: 1, kind: input, shape index: {}]
  %s2 = inlined_call_operand.hbm [shape: bf16[3,128,128], index: 2, kind: input, shape index: {}]
  %s3 = inlined_call_operand.vmem [shape: bf16[128,16], index: 3, kind: input, shape index: {}]
  %s4 = inlined_call_operand.vmem [shape: f32[3,128], index: 4, kind: input, shape index: {}]
  %s5 = inlined_call_operand.vmem [shape: bf16[32,16], index: 5, kind: output, shape index: {}]
  %s6 = sld [smem:[#allocation0]]
  $region57: #{tpu_custom_call.1} parent=0
    _
  %s8 = ssub.s32 1, %s6
  %s9 = scalar_select 0, %s8, %s6
  $region1: #{tpu_custom_call.1} parent=0
    #allocation2 [shape = 'u8[98304]{0}', space=vmem, size = 0x18000, scoped, tag = 'input window, operand 2, single buffered']
    #allocation3 [shape = 's32[2]{0}', space=sflag, size = 0x8, scoped, tag = 'scoped memory for tpu_custom_call.1']
    %10 = vsyncpa [#allocation3], 0
    loop: start=0, step=1, limit=4
    $region2: #{tpu_custom_call.1} parent=1 // loop_pre_header
      _
    $region3: #{tpu_custom_call.1} parent=1 // loop_header
      %s12 = sphi 0, %s16
      %p13 = scmp.ge.s32.totalorder %s12, 4
      %s22 = sphi 0, %s24
      %s25 = sphi 0, %s22
      %s26 = sphi 0, %s25
      %s42 = sphi 0, %s26
      %s46 = sphi 0, %s46
      %s48 = sphi 0, %s46
      %s49 = sphi 0, %s48
      %s63 = sphi 0, %s49
      %s67 = sphi 0, %s67
      %s69 = sphi 0, %s67
      %s70 = sphi 0, %s69
      %s84 = sphi 0, %s70
      %s88 = sphi 0, %s88
      %s90 = sphi 0, %s88
      %s91 = sphi 0, %s90
      %s105 = sphi 0, %s91
      %s109 = sphi 0, %s109
      %s111 = sphi 0, %s109
      %s112 = sphi 0, %s111
      %s126 = sphi 0, %s112
      %s132 = sphi 0, %s134
      %s135 = sphi 0, %s132
      %s136 = sphi 0, %s135
      %s152 = sphi 0, %s136
    $region4: #{tpu_custom_call.1} parent=1 // loop_header_branch
      %15 = sbr.rel (%p13) target = $region8
    $region5: #{tpu_custom_call.1} parent=1 // loop_body
      %s17 = ssub.s32 %s12, 1
      %s18 = ssub.s32 %s12, 2
      %s19 = sadd.s32 %s12, 1
      %s20 = ssub.s32 %s12, %s19
      %p21 = scmp.eq.s32.totalorder %s20, 0
      %s23 = sadd.s32 %s22, 1
      %s24 = scalar_select %p21, %s22, %s23
      %p27 = pneg %p21
      %p28 = scmp.eq.s32.totalorder %s12, 1
      %p29 = por %p27, %p28
      %p30 = scmp.ne.s32.totalorder %s22, %s25
      %p31 = scmp.eq.s32.totalorder %s12, 0
      %p32 = por %p30, %p31
      %p33 = scmp.ne.s32.totalorder %s22, %s25
      %p34 = scmp.eq.s32.totalorder %s17, 1
      %p35 = por %p33, %p34
      %p36 = scmp.ne.s32.totalorder %s25, %s26
      %p37 = scmp.eq.s32.totalorder %s17, 0
      %p38 = por %p36, %p37
      %p39 = scmp.ne.s32.totalorder %s25, %s26
      %p40 = scmp.eq.s32.totalorder %s18, 1
      %p41 = por %p39, %p40
      %p43 = scmp.ne.s32.totalorder %s26, %s42
      %p44 = scmp.eq.s32.totalorder %s18, 0
      %p45 = por %p43, %p44
      %s47 = sadd.s32 %s46, 1
      %p50 = scmp.eq.s32.totalorder %s12, 1
      %p51 = scmp.ne.s32.totalorder %s46, %s48
      %p52 = scmp.eq.s32.totalorder %s12, 0
      %p53 = por %p51, %p52
      %p54 = scmp.ne.s32.totalorder %s46, %s48
      %p55 = scmp.eq.s32.totalorder %s17, 1
      %p56 = por %p54, %p55
      %p57 = scmp.ne.s32.totalorder %s48, %s49
      %p58 = scmp.eq.s32.totalorder %s17, 0
      %p59 = por %p57, %p58
      %p60 = scmp.ne.s32.totalorder %s48, %s49
      %p61 = scmp.eq.s32.totalorder %s18, 1
      %p62 = por %p60, %p61
      %p64 = scmp.ne.s32.totalorder %s49, %s63
      %p65 = scmp.eq.s32.totalorder %s18, 0
      %p66 = por %p64, %p65
      %s68 = sadd.s32 %s67, 1
      %p71 = scmp.eq.s32.totalorder %s12, 1
      %p72 = scmp.ne.s32.totalorder %s67, %s69
      %p73 = scmp.eq.s32.totalorder %s12, 0
      %p74 = por %p72, %p73
      %p75 = scmp.ne.s32.totalorder %s67, %s69
      %p76 = scmp.eq.s32.totalorder %s17, 1
      %p77 = por %p75, %p76
      %p78 = scmp.ne.s32.totalorder %s69, %s70
      %p79 = scmp.eq.s32.totalorder %s17, 0
      %p80 = por %p78, %p79
      %p81 = scmp.ne.s32.totalorder %s69, %s70
      %p82 = scmp.eq.s32.totalorder %s18, 1
      %p83 = por %p81, %p82
      %p85 = scmp.ne.s32.totalorder %s70, %s84
      %p86 = scmp.eq.s32.totalorder %s18, 0
      %p87 = por %p85, %p86
      %s89 = sadd.s32 %s88, 1
      %p92 = scmp.eq.s32.totalorder %s12, 1
      %p93 = scmp.ne.s32.totalorder %s88, %s90
      %p94 = scmp.eq.s32.totalorder %s12, 0
      %p95 = por %p93, %p94
      %p96 = scmp.ne.s32.totalorder %s88, %s90
      %p97 = scmp.eq.s32.totalorder %s17, 1
      %p98 = por %p96, %p97
      %p99 = scmp.ne.s32.totalorder %s90, %s91
      %p100 = scmp.eq.s32.totalorder %s17, 0
      %p101 = por %p99, %p100
      %p102 = scmp.ne.s32.totalorder %s90, %s91
      %p103 = scmp.eq.s32.totalorder %s18, 1
      %p104 = por %p102, %p103
      %p106 = scmp.ne.s32.totalorder %s91, %s105
      %p107 = scmp.eq.s32.totalorder %s18, 0
      %p108 = por %p106, %p107
      %s110 = sadd.s32 %s109, 1
      %p113 = scmp.eq.s32.totalorder %s12, 1
      %p114 = scmp.ne.s32.totalorder %s109, %s111
      %p115 = scmp.eq.s32.totalorder %s12, 0
      %p116 = por %p114, %p115
      %p117 = scmp.ne.s32.totalorder %s109, %s111
      %p118 = scmp.eq.s32.totalorder %s17, 1
      %p119 = por %p117, %p118
      %p120 = scmp.ne.s32.totalorder %s111, %s112
      %p121 = scmp.eq.s32.totalorder %s17, 0
      %p122 = por %p120, %p121
      %p123 = scmp.ne.s32.totalorder %s111, %s112
      %p124 = scmp.eq.s32.totalorder %s18, 1
      %p125 = por %p123, %p124
      %p127 = scmp.ne.s32.totalorder %s112, %s126
      %p128 = scmp.eq.s32.totalorder %s18, 0
      %p129 = por %p127, %p128
      %s130 = ssub.s32 %s12, %s19
      %p131 = scmp.eq.s32.totalorder %s130, 0
      %s133 = sadd.s32 %s132, 1
      %s134 = scalar_select %p131, %s132, %s133
      %p137 = pneg %p131
      %p138 = scmp.eq.s32.totalorder %s12, 1
      %p139 = por %p137, %p138
      %p140 = scmp.ne.s32.totalorder %s132, %s135
      %p141 = scmp.eq.s32.totalorder %s12, 0
      %p142 = por %p140, %p141
      %p143 = scmp.ne.s32.totalorder %s132, %s135
      %p144 = scmp.eq.s32.totalorder %s17, 1
      %p145 = por %p143, %p144
      %p146 = scmp.ne.s32.totalorder %s135, %s136
      %p147 = scmp.eq.s32.totalorder %s17, 0
      %p148 = por %p146, %p147
      %p149 = scmp.ne.s32.totalorder %s135, %s136
      %p150 = scmp.eq.s32.totalorder %s18, 1
      %p151 = por %p149, %p150
      %p153 = scmp.ne.s32.totalorder %s136, %s152
      %p154 = scmp.eq.s32.totalorder %s18, 0
      %p155 = por %p153, %p154
      %p156 = scmp.le.s32.totalorder 1, %s12
      %p157 = scmp.lt.s32.totalorder %s12, 3
      %p158 = pnand %p156, %p157
      %p159 = pneg %p158
      // Predicated region
      $region9: #{tpu_custom_call.1} parent=5 // pred_check
        _
      $region10: #{tpu_custom_call.1} parent=5 // pred_check_branch
        %161 = sbr.rel (%p158) target = $region12
      $region11: #{tpu_custom_call.1} parent=5 // pred_region
        %s162 = ssub.s32 %s12, 1
        // Predicated region
        $region13: #{tpu_custom_call.1} parent=11 // pred_check
          %p163 = pneg %p59
        $region14: #{tpu_custom_call.1} parent=11 // pred_check_branch
          %165 = sbr.rel (%p163) target = $region16
        $region15: #{tpu_custom_call.1} parent=11 // pred_region
          _
        $region16: #{tpu_custom_call.1} parent=11 // pred_fallthru
          _
        // Predicated region
        $region17: #{tpu_custom_call.1} parent=11 // pred_check
          %p166 = pneg %p80
        $region18: #{tpu_custom_call.1} parent=11 // pred_check_branch
          %168 = sbr.rel (%p166) target = $region20
        $region19: #{tpu_custom_call.1} parent=11 // pred_region
          %170 = vsyncadd [#allocation3], 0
          %s171 = sshll.u32 %s2, 4
          %s172 = int_to_ptr.hbm [resolvable:$true] %s171
          %s173 = sshll.u32 [#allocation2], 4
          %s174 = int_to_ptr.vmem [resolvable:$true] %s173
          %179 = dma.hbm_to_vmem [thread:$0]  %s172, 3072, %s174, [#allocation3], 64, 64, 4
        $region20: #{tpu_custom_call.1} parent=11 // pred_fallthru
          _
        // Predicated region
        $region21: #{tpu_custom_call.1} parent=11 // pred_check
          %p180 = pneg %p101
        $region22: #{tpu_custom_call.1} parent=11 // pred_check_branch
          %182 = sbr.rel (%p180) target = $region24
        $region23: #{tpu_custom_call.1} parent=11 // pred_region
          _
        $region24: #{tpu_custom_call.1} parent=11 // pred_fallthru
          _
        // Predicated region
        $region25: #{tpu_custom_call.1} parent=11 // pred_check
          %p183 = pneg %p122
        $region26: #{tpu_custom_call.1} parent=11 // pred_check_branch
          %185 = sbr.rel (%p183) target = $region28
        $region27: #{tpu_custom_call.1} parent=11 // pred_region
          _
        $region28: #{tpu_custom_call.1} parent=11 // pred_fallthru
          _
      $region12: #{tpu_custom_call.1} parent=5 // pred_fallthru
        _
      %p186 = scmp.lt.s32.totalorder %s12, 2
      // Predicated region
      $region29: #{tpu_custom_call.1} parent=5 // pred_check
        %p187 = pneg %p186
      $region30: #{tpu_custom_call.1} parent=5 // pred_check_branch
        %189 = sbr.rel (%p187) target = $region32
      $region31: #{tpu_custom_call.1} parent=5 // pred_region
        // Predicated region
        $region33: #{tpu_custom_call.1} parent=31 // pred_check
          %p190 = pneg %p32
        $region34: #{tpu_custom_call.1} parent=31 // pred_check_branch
          %192 = sbr.rel (%p190) target = $region36
        $region35: #{tpu_custom_call.1} parent=31 // pred_region
          %s193 = smul.u32 2, %s12
          %p194 = scmp.lt.s32.totalorder %s193, 3
          %s195 = scalar_select %p194, %s193, 3
          %s196 = smul.addr %s195, 4
          %s197 = scalar_lea.vmem %s0, %s196
          %s198 = smul.u32 2, %s12
        $region36: #{tpu_custom_call.1} parent=31 // pred_fallthru
          _
      $region32: #{tpu_custom_call.1} parent=5 // pred_fallthru
        _
      %p199 = scmp.le.s32.totalorder 1, %s12
      %p200 = scmp.lt.s32.totalorder %s12, 3
      %p201 = pnand %p199, %p200
      %p202 = pneg %p201
      // Predicated region
      $region37: #{tpu_custom_call.1} parent=5 // pred_check
        _
      $region38: #{tpu_custom_call.1} parent=5 // pred_check_branch
        %204 = sbr.rel (%p201) target = $region40
      $region39: #{tpu_custom_call.1} parent=5 // pred_region
        %s205 = ssub.s32 %s12, 1
        // Predicated region
        $region41: #{tpu_custom_call.1} parent=39 // pred_check
          %p206 = pneg %p80
        $region42: #{tpu_custom_call.1} parent=39 // pred_check_branch
          %208 = sbr.rel (%p206) target = $region44
        $region43: #{tpu_custom_call.1} parent=39 // pred_region
          %210 = dma.done [#allocation3], 3072
        $region44: #{tpu_custom_call.1} parent=39 // pred_fallthru
          _
        %s211 = smul.u32 2, %s17
        %p212 = scmp.lt.s32.totalorder %s211, 3
        %s213 = scalar_select %p212, %s211, 3
        %s214 = smul.addr %s213, 4
        %s215 = scalar_lea.vmem %s0, %s214
        %p216 = pneg %p38
        %p217 = pneg %p35
        %p218 = pneg %p59
        %p219 = pneg %p56
        %p220 = pneg %p80
        %p221 = pneg %p77
        %p222 = pneg %p101
        %p223 = pneg %p98
        %p224 = pneg %p122
        %p225 = pneg %p119
        %p226 = pneg %p148
        %p227 = pneg %p145
        %s228 = smul.u32 2, %s17
        %p229 = scmp.lt.s32.totalorder %s228, 3
        %s230 = scalar_select %p229, %s228, 3
        %s231 = smul.addr %s230, 4
        %s232 = scalar_lea.vmem %s5, %s231
        %s233 = smul.u32 2, %s17
        %p234 = scmp.lt.s32.totalorder %s233, 3
        %s235 = scalar_select %p234, %s233, 3
        %s236 = smul.addr %s235, 4
        %s237 = scalar_lea.vmem %s0, %s236
        %s238 = smul.u32 2, %s17
        %s239 = smul.u32 2, %s17
        %p240 = scmp.lt.s32.totalorder %s239, 3
        %s241 = scalar_select %p240, %s239, 3
        %s242 = smul.addr %s241, 4
        %s243 = scalar_lea.vmem %s5, %s242
        %s244 = smul.u32 2, %s17
        %v246 = vld [vmem:[%s237] sm:$0xf]
        %v247 = vld [vmem:[%s237 + $0x4] sm:$0xf]
        %v248 = vld [vmem:[%s4] sm:$0x7]
        %v249 = vld [vmem:[%s1] sm:$0xf]
        %v250 = vld [vmem:[%s1 + $0x4] sm:$0xf]
        %v251 = vperm.slane %v248, 0
        %v254 = vunpack.c.l.b16 %v246
        %v255 = vunpack.c.l.b16 %v247
        %v256 = vpack.c.b16 %v255, %v254
        %v259 = vunpack.c.l.b16 %v249
        %v260 = vunpack.c.l.b16 %v250
        %v261 = vpack.c.b16 %v260, %v259
        %vm263 = vcmask 130048
        %v265 = vsel %vm263, %v256, 0
        %267 = vmatpush.bf16.msra.mxu0 0
        %268 = vmatpush.bf16.msra.mxu0 0
        %269 = vmatpush.bf16.msra.mxu0 0
        %270 = vmatpush.bf16.msra.mxu0 0
        %271 = vmatpush.bf16.msra.mxu0 0
        %272 = vmatpush.bf16.msra.mxu0 0
        %273 = vmatpush.bf16.msra.mxu0 0
        %274 = vmatpush.bf16.msra.mxu0 %v261
        %275 = vmatmul.bf16.gmra.mxu0 %v265
        %v276 = vpop.f32.mrf.mxu0
        %v277 = vadd.f32 %v251, %v276
        %v278 = vpop.f32.mrf.mxu0
        %v279 = vadd.f32 %v251, %v278
        %280 = vdwg.mxu0
        %v281 = vmax.f32 %v277, 0.0
        %v282 = vmax.f32 %v279, 0.0
        %v283 = vlaneseq
        %v284 = vshrl.u32 %v283, 7
        %v285 = vadd.s32 %v284, 8
        %vm286 = vcmp.lt.s32.totalorder %v284, 0
        %v287 = vsub.s32 0, %v284
        %v288 = vsel %vm286, %v287, %v284
        %v289 = vshrl.u32 %v288, 4
        %v290 = vand.u32 %v288, 15
        %v291 = vsub.s32 0, %v290
        %v292 = vsel %vm286, %v291, %v290
        %vm293 = vcmp.lt.s32.totalorder %v285, 0
        %v294 = vsub.s32 0, %v285
        %v295 = vsel %vm293, %v294, %v285
        %v296 = vshrl.u32 %v295, 4
        %v297 = vand.u32 %v295, 15
        %v298 = vsub.s32 0, %v297
        %v299 = vsel %vm293, %v298, %v297
        %vm300 = vcmp.ne.s32.totalorder %v292, 0
        %vm301 = vcmp.ne.s32.totalorder %v299, 0
        %vm302 = vcmp.lt.s32.totalorder %v292, 0
        %vm303 = vcmp.lt.s32.totalorder %v299, 0
        %vm304 = vmand %vm302, %vm300
        %vm305 = vmand %vm303, %vm301
        %v306 = vadd.s32 %v292, 16
        %v307 = vadd.s32 %v299, 16
        %v308 = vsel %vm304, %v306, %v292
        %v309 = vsel %vm305, %v307, %v299
        %vm310 = vcmp.ne.s32.totalorder %v308, 0
        %vm311 = vcmp.ne.s32.totalorder %v309, 0
        %v312 = vsel %vm310, 1, 0
        %v313 = vsel %vm311, 1, 0
        %v314 = vcvt.s32.f32 %v312
        %v315 = vcvt.s32.f32 %v313
        %vm316 = vcmp.ne.s32.totalorder %v308, 15
        %vm317 = vcmp.ne.s32.totalorder %v309, 15
        %v318 = vsel %vm316, 1, 0
        %v319 = vsel %vm317, 1, 0
        %v320 = vcvt.s32.f32 %v318
        %v321 = vcvt.s32.f32 %v319
        %v322 = vpack.c.bf16 %v282, %v281
        %v323 = vrot.slane %v281, 7
        %v324 = vrot.slane %v282, 7
        %vm325 = vcmp.lt.s32.totalorder %v284, 1
        %v326 = vsel %vm325, %v323, %v324
        %v327 = vsel %vm325, %v324, %v323
        %v328 = vmul.f32 %v327, %v314
        %v329 = vmul.f32 %v326, %v315
        %v330 = vpack.c.bf16 %v329, %v328
        %v331 = vrot.slane %v281, 1
        %v332 = vrot.slane %v282, 1
        %vm333 = vcmp.lt.s32.totalorder %v284, 7
        %v334 = vsel %vm333, %v331, %v332
        %v335 = vsel %vm333, %v332, %v331
        %v336 = vmul.f32 %v334, %v320
        %v337 = vmul.f32 %v335, %v321
        %v338 = vpack.c.bf16 %v337, %v336
        %s339 = scalar_lea.vmem [#allocation2], 64
        %v340 = vld [vmem:[%s339] sm:$0xf]
        %v341 = vld [vmem:[%s339 + $0x4] sm:$0xf]
        %v342 = vld [vmem:[%s339 + $0x8] sm:$0xf]
        %v343 = vld [vmem:[%s339 + $0xc] sm:$0xf]
        %v344 = vld [vmem:[%s339 + $0x10] sm:$0xf]
        %v345 = vld [vmem:[%s339 + $0x14] sm:$0xf]
        %v346 = vld [vmem:[%s339 + $0x18] sm:$0xf]
        %v347 = vld [vmem:[%s339 + $0x1c] sm:$0xf]
        %v348 = vld [vmem:[%s339 + $0x20] sm:$0xf]
        %v349 = vld [vmem:[%s339 + $0x24] sm:$0xf]
        %v350 = vld [vmem:[%s339 + $0x28] sm:$0xf]
        %v351 = vld [vmem:[%s339 + $0x2c] sm:$0xf]
        %v352 = vld [vmem:[%s339 + $0x30] sm:$0xf]
        %v353 = vld [vmem:[%s339 + $0x34] sm:$0xf]
        %v354 = vld [vmem:[%s339 + $0x38] sm:$0xf]
        %v355 = vld [vmem:[%s339 + $0x3c] sm:$0xf]
        %v356 = vld [vmem:[#allocation2] sm:$0xf]
        %v357 = vld [vmem:[#allocation2 + $0x4] sm:$0xf]
        %v358 = vld [vmem:[#allocation2 + $0x8] sm:$0xf]
        %v359 = vld [vmem:[#allocation2 + $0xc] sm:$0xf]
        %v360 = vld [vmem:[#allocation2 + $0x10] sm:$0xf]
        %v361 = vld [vmem:[#allocation2 + $0x14] sm:$0xf]
        %v362 = vld [vmem:[#allocation2 + $0x18] sm:$0xf]
        %v363 = vld [vmem:[#allocation2 + $0x1c] sm:$0xf]
        %v364 = vld [vmem:[#allocation2 + $0x20] sm:$0xf]
        %v365 = vld [vmem:[#allocation2 + $0x24] sm:$0xf]
        %v366 = vld [vmem:[#allocation2 + $0x28] sm:$0xf]
        %v367 = vld [vmem:[#allocation2 + $0x2c] sm:$0xf]
        %v368 = vld [vmem:[#allocation2 + $0x30] sm:$0xf]
        %v369 = vld [vmem:[#allocation2 + $0x34] sm:$0xf]
        %v370 = vld [vmem:[#allocation2 + $0x38] sm:$0xf]
        %v371 = vld [vmem:[#allocation2 + $0x3c] sm:$0xf]
        %v388 = vunpack.c.l.b16 %v356
        %v389 = vunpack.c.l.b16 %v357
        %v390 = vunpack.c.l.b16 %v358
        %v391 = vunpack.c.l.b16 %v359
        %v392 = vunpack.c.l.b16 %v360
        %v393 = vunpack.c.l.b16 %v361
        %v394 = vunpack.c.l.b16 %v362
        %v395 = vunpack.c.l.b16 %v363
        %v396 = vunpack.c.l.b16 %v364
        %v397 = vunpack.c.l.b16 %v365
        %v398 = vunpack.c.l.b16 %v366
        %v399 = vunpack.c.l.b16 %v367
        %v400 = vunpack.c.l.b16 %v368
        %v401 = vunpack.c.l.b16 %v369
        %v402 = vunpack.c.l.b16 %v370
        %v403 = vunpack.c.l.b16 %v371
        %v404 = vpack.c.b16 %v389, %v388
        %v405 = vpack.c.b16 %v391, %v390
        %v406 = vpack.c.b16 %v393, %v392
        %v407 = vpack.c.b16 %v395, %v394
        %v408 = vpack.c.b16 %v397, %v396
        %v409 = vpack.c.b16 %v399, %v398
        %v410 = vpack.c.b16 %v401, %v400
        %v411 = vpack.c.b16 %v403, %v402
        %420 = vmatpush.bf16.msra.mxu0 %v411
        %421 = vmatpush.bf16.msra.mxu0 %v410
        %422 = vmatpush.bf16.msra.mxu0 %v409
        %423 = vmatpush.bf16.msra.mxu0 %v408
        %424 = vmatpush.bf16.msra.mxu0 %v407
        %425 = vmatpush.bf16.msra.mxu0 %v406
        %426 = vmatpush.bf16.msra.mxu0 %v405
        %427 = vmatpush.bf16.msra.mxu0 %v404
        %428 = vmatmul.bf16.gmra.mxu0 %v330
        %v429 = vpop.f32.mrf.mxu0
        %v430 = vadd.f32 0.0, %v429
        %v431 = vpop.f32.mrf.mxu0
        %v432 = vadd.f32 0.0, %v431
        %433 = vdwg.mxu0
        %v450 = vunpack.c.l.b16 %v340
        %v451 = vunpack.c.l.b16 %v341
        %v452 = vunpack.c.l.b16 %v342
        %v453 = vunpack.c.l.b16 %v343
        %v454 = vunpack.c.l.b16 %v344
        %v455 = vunpack.c.l.b16 %v345
        %v456 = vunpack.c.l.b16 %v346
        %v457 = vunpack.c.l.b16 %v347
        %v458 = vunpack.c.l.b16 %v348
        %v459 = vunpack.c.l.b16 %v349
        %v460 = vunpack.c.l.b16 %v350
        %v461 = vunpack.c.l.b16 %v351
        %v462 = vunpack.c.l.b16 %v352
        %v463 = vunpack.c.l.b16 %v353
        %v464 = vunpack.c.l.b16 %v354
        %v465 = vunpack.c.l.b16 %v355
        %v466 = vpack.c.b16 %v451, %v450
        %v467 = vpack.c.b16 %v453, %v452
        %v468 = vpack.c.b16 %v455, %v454
        %v469 = vpack.c.b16 %v457, %v456
        %v470 = vpack.c.b16 %v459, %v458
        %v471 = vpack.c.b16 %v461, %v460
        %v472 = vpack.c.b16 %v463, %v462
        %v473 = vpack.c.b16 %v465, %v464
        %482 = vmatpush.bf16.msra.mxu0 %v473
        %483 = vmatpush.bf16.msra.mxu0 %v472
        %484 = vmatpush.bf16.msra.mxu0 %v471
        %485 = vmatpush.bf16.msra.mxu0 %v470
        %486 = vmatpush.bf16.msra.mxu0 %v469
        %487 = vmatpush.bf16.msra.mxu0 %v468
        %488 = vmatpush.bf16.msra.mxu0 %v467
        %489 = vmatpush.bf16.msra.mxu0 %v466
        %490 = vmatmul.bf16.gmra.mxu0 %v322
        %v491 = vpop.f32.mrf.mxu0
        %v492 = vadd.f32 %v430, %v491
        %v493 = vpop.f32.mrf.mxu0
        %v494 = vadd.f32 %v432, %v493
        %495 = vdwg.mxu0
        %s496 = scalar_lea.vmem [#allocation2], 128
        %v497 = vld [vmem:[%s496] sm:$0xf]
        %v498 = vld [vmem:[%s496 + $0x4] sm:$0xf]
        %v499 = vld [vmem:[%s496 + $0x8] sm:$0xf]
        %v500 = vld [vmem:[%s496 + $0xc] sm:$0xf]
        %v501 = vld [vmem:[%s496 + $0x10] sm:$0xf]
        %v502 = vld [vmem:[%s496 + $0x14] sm:$0xf]
        %v503 = vld [vmem:[%s496 + $0x18] sm:$0xf]
        %v504 = vld [vmem:[%s496 + $0x1c] sm:$0xf]
        %v505 = vld [vmem:[%s496 + $0x20] sm:$0xf]
        %v506 = vld [vmem:[%s496 + $0x24] sm:$0xf]
        %v507 = vld [vmem:[%s496 + $0x28] sm:$0xf]
        %v508 = vld [vmem:[%s496 + $0x2c] sm:$0xf]
        %v509 = vld [vmem:[%s496 + $0x30] sm:$0xf]
        %v510 = vld [vmem:[%s496 + $0x34] sm:$0xf]
        %v511 = vld [vmem:[%s496 + $0x38] sm:$0xf]
        %v512 = vld [vmem:[%s496 + $0x3c] sm:$0xf]
        %v529 = vunpack.c.l.b16 %v497
        %v530 = vunpack.c.l.b16 %v498
        %v531 = vunpack.c.l.b16 %v499
        %v532 = vunpack.c.l.b16 %v500
        %v533 = vunpack.c.l.b16 %v501
        %v534 = vunpack.c.l.b16 %v502
        %v535 = vunpack.c.l.b16 %v503
        %v536 = vunpack.c.l.b16 %v504
        %v537 = vunpack.c.l.b16 %v505
        %v538 = vunpack.c.l.b16 %v506
        %v539 = vunpack.c.l.b16 %v507
        %v540 = vunpack.c.l.b16 %v508
        %v541 = vunpack.c.l.b16 %v509
        %v542 = vunpack.c.l.b16 %v510
        %v543 = vunpack.c.l.b16 %v511
        %v544 = vunpack.c.l.b16 %v512
        %v545 = vpack.c.b16 %v530, %v529
        %v546 = vpack.c.b16 %v532, %v531
        %v547 = vpack.c.b16 %v534, %v533
        %v548 = vpack.c.b16 %v536, %v535
        %v549 = vpack.c.b16 %v538, %v537
        %v550 = vpack.c.b16 %v540, %v539
        %v551 = vpack.c.b16 %v542, %v541
        %v552 = vpack.c.b16 %v544, %v543
        %561 = vmatpush.bf16.msra.mxu0 %v552
        %562 = vmatpush.bf16.msra.mxu0 %v551
        %563 = vmatpush.bf16.msra.mxu0 %v550
        %564 = vmatpush.bf16.msra.mxu0 %v549
        %565 = vmatpush.bf16.msra.mxu0 %v548
        %566 = vmatpush.bf16.msra.mxu0 %v547
        %567 = vmatpush.bf16.msra.mxu0 %v546
        %568 = vmatpush.bf16.msra.mxu0 %v545
        %569 = vmatmul.bf16.gmra.mxu0 %v338
        %v570 = vpop.f32.mrf.mxu0
        %v571 = vadd.f32 0.0, %v570
        %v572 = vpop.f32.mrf.mxu0
        %v573 = vadd.f32 0.0, %v572
        %574 = vdwg.mxu0
        %v575 = vadd.f32 %v492, %v571
        %v576 = vadd.f32 %v494, %v573
        %v577 = vperm.slane %v248, 1
        %v578 = vadd.f32 %v575, %v577
        %v579 = vadd.f32 %v576, %v577
        %v580 = vmax.f32 %v578, 0.0
        %v581 = vmax.f32 %v579, 0.0
        %v582 = vpack.c.bf16 %v581, %v580
        %v583 = vld [vmem:[%s3] sm:$0xf]
        %v584 = vld [vmem:[%s3 + $0x4] sm:$0xf]
        %v585 = vld [vmem:[%s3 + $0x8] sm:$0xf]
        %v586 = vld [vmem:[%s3 + $0xc] sm:$0xf]
        %v587 = vld [vmem:[%s3 + $0x10] sm:$0xf]
        %v588 = vld [vmem:[%s3 + $0x14] sm:$0xf]
        %v589 = vld [vmem:[%s3 + $0x18] sm:$0xf]
        %v590 = vld [vmem:[%s3 + $0x1c] sm:$0xf]
        %v591 = vld [vmem:[%s3 + $0x20] sm:$0xf]
        %v592 = vld [vmem:[%s3 + $0x24] sm:$0xf]
        %v593 = vld [vmem:[%s3 + $0x28] sm:$0xf]
        %v594 = vld [vmem:[%s3 + $0x2c] sm:$0xf]
        %v595 = vld [vmem:[%s3 + $0x30] sm:$0xf]
        %v596 = vld [vmem:[%s3 + $0x34] sm:$0xf]
        %v597 = vld [vmem:[%s3 + $0x38] sm:$0xf]
        %v598 = vld [vmem:[%s3 + $0x3c] sm:$0xf]
        %v599 = vperm.slane %v248, 2
        %v616 = vunpack.c.l.b16 %v583
        %v617 = vunpack.c.l.b16 %v584
        %v618 = vunpack.c.l.b16 %v585
        %v619 = vunpack.c.l.b16 %v586
        %v620 = vunpack.c.l.b16 %v587
        %v621 = vunpack.c.l.b16 %v588
        %v622 = vunpack.c.l.b16 %v589
        %v623 = vunpack.c.l.b16 %v590
        %v624 = vunpack.c.l.b16 %v591
        %v625 = vunpack.c.l.b16 %v592
        %v626 = vunpack.c.l.b16 %v593
        %v627 = vunpack.c.l.b16 %v594
        %v628 = vunpack.c.l.b16 %v595
        %v629 = vunpack.c.l.b16 %v596
        %v630 = vunpack.c.l.b16 %v597
        %v631 = vunpack.c.l.b16 %v598
        %v632 = vpack.c.b16 %v617, %v616
        %v633 = vpack.c.b16 %v619, %v618
        %v634 = vpack.c.b16 %v621, %v620
        %v635 = vpack.c.b16 %v623, %v622
        %v636 = vpack.c.b16 %v625, %v624
        %v637 = vpack.c.b16 %v627, %v626
        %v638 = vpack.c.b16 %v629, %v628
        %v639 = vpack.c.b16 %v631, %v630
        %648 = vmatpush.bf16.msra.mxu0 %v639
        %649 = vmatpush.bf16.msra.mxu0 %v638
        %650 = vmatpush.bf16.msra.mxu0 %v637
        %651 = vmatpush.bf16.msra.mxu0 %v636
        %652 = vmatpush.bf16.msra.mxu0 %v635
        %653 = vmatpush.bf16.msra.mxu0 %v634
        %654 = vmatpush.bf16.msra.mxu0 %v633
        %655 = vmatpush.bf16.msra.mxu0 %v632
        %656 = vmatmul.bf16.gmra.mxu0 %v582
        %v657 = vpop.f32.mrf.mxu0
        %v658 = vadd.f32 %v599, %v657
        %v659 = vpop.f32.mrf.mxu0
        %v660 = vadd.f32 %v599, %v659
        %661 = vdwg.mxu0
        %v662 = vunpack.c.l.bf16 %v246
        %v663 = vunpack.c.l.bf16 %v247
        %v664 = vadd.f32 %v658, %v662
        %v665 = vadd.f32 %v660, %v663
        %v666 = vmax.f32 %v664, 0.0
        %v667 = vmax.f32 %v665, 0.0
        %v668 = vpack.c.bf16 %v666, %v666
        %v669 = vpack.c.bf16 %v667, %v667
        %vm670 = vcmask 125952
        %671 = vst.msk [vmem:[%s243] sm:$0xf] %vm670, %v668
        %672 = vst.msk [vmem:[%s243 + $0x4] sm:$0xf] %vm670, %v669
        %s673 = smul.u32 2, %s17
        %p674 = scmp.lt.s32.totalorder %s673, 3
        %s675 = scalar_select %p674, %s673, 3
        %s676 = smul.addr %s675, 4
        %s677 = scalar_lea.vmem %s5, %s676
        // Predicated region
        $region45: #{tpu_custom_call.1} parent=39 // pred_check
          %p678 = pneg %p145
        $region46: #{tpu_custom_call.1} parent=39 // pred_check_branch
          %680 = sbr.rel (%p678) target = $region48
        $region47: #{tpu_custom_call.1} parent=39 // pred_region
          %s681 = smul.u32 2, %s17
        $region48: #{tpu_custom_call.1} parent=39 // pred_fallthru
          _
      $region40: #{tpu_custom_call.1} parent=5 // pred_fallthru
        _
      %p682 = scmp.le.s32.totalorder 2, %s12
      // Predicated region
      $region49: #{tpu_custom_call.1} parent=5 // pred_check
        %p683 = pneg %p682
      $region50: #{tpu_custom_call.1} parent=5 // pred_check_branch
        %685 = sbr.rel (%p683) target = $region52
      $region51: #{tpu_custom_call.1} parent=5 // pred_region
        %s686 = ssub.s32 %s12, 2
        // Predicated region
        $region53: #{tpu_custom_call.1} parent=51 // pred_check
          %p687 = pneg %p151
        $region54: #{tpu_custom_call.1} parent=51 // pred_check_branch
          %689 = sbr.rel (%p687) target = $region56
        $region55: #{tpu_custom_call.1} parent=51 // pred_region
          %s690 = smul.u32 2, %s18
          %p691 = scmp.lt.s32.totalorder %s690, 3
          %s692 = scalar_select %p691, %s690, 3
          %s693 = smul.addr %s692, 4
          %s694 = scalar_lea.vmem %s5, %s693
        $region56: #{tpu_custom_call.1} parent=51 // pred_fallthru
          _
      $region52: #{tpu_custom_call.1} parent=5 // pred_fallthru
        _
    $region6: #{tpu_custom_call.1} parent=1 // loop_footer
      %s16 = sadd.s32 1, %s12
    $region7: #{tpu_custom_call.1} parent=1 // loop_footer_branch
      %11 = sbr.rel target = $region3
    $region8: #{tpu_custom_call.1} parent=1 // loop_exit
      _
    %695 = vsyncpa [#allocation3], 1
    %s696 = scalar_lea.sflag [#allocation3], 1
    %697 = vsyncpa %s696, 1

</llo_original>
